<compile_context>
chip_gen: v6e
topology: v6e:2x2x1
jax: 0.10.0
libtpu: 0.0.40
codegen_flags: <defaults>
</compile_context>

<pallas_src>
import functools

import jax
import jax.numpy as jnp
from jax.experimental import pallas as pl
from jax.experimental.pallas import tpu as pltpu


_MIN_PALLAS_BYTES = 1 << 20      # below this, a fused jnp expression beats kernel launch overhead
_TILE_BYTES_TARGET = 6 << 20     # ~6 MiB/block -> ~24 MiB pipelined (2x in + 2x out double-buffers)
_MAX_LANE_TILE = 32768           # lane-tile cap for huge images (multiple of 128)
_VMEM_LIMIT_BYTES = 32 << 20     # explicit scoped-VMEM limit (fits v5e/v6e/v7x)


# ----------------------------- Pallas kernel --------------------------------
def np_affine_kernel(x_ref, a_ref, o_ref):
    # a in {+1,-1}; derive b = (1-a)/2 in {0,1} in-kernel (exact for f32/bf16) so
    # only one auxiliary vector is streamed.  Flip:  o = x*a + b
    #   key==1: a=-1, b=1 -> 1 - x ;  key==0: a=+1, b=0 -> x
    a = a_ref[...]
    b = (1.0 - a) * 0.5
    o_ref[...] = x_ref[...] * a + b


def _choose_tiles(B, CHW, itemsize):
    """Pick (tile_b, tile_l): lane-dense, sublane-aligned, VMEM-budgeted tiles."""
    # Lane (last-dim) tile: full CHW when small, else a large multiple of 128.
    tile_l = CHW if CHW <= _MAX_LANE_TILE else _MAX_LANE_TILE

    if B <= 8:
        tile_b = B                               # block dim == full array dim: always legal
    else:
        max_rows = max(8, _TILE_BYTES_TARGET // (tile_l * itemsize))
        tile_b = min(B, max_rows)
        if tile_b >= B and B >= 16:
            # Keep >= 2 grid steps on the row axis so v7x's two TensorCores are both
            # fed; harmless on single-TC v5e/v6e.
            tile_b = pl.cdiv(B, 2)
        tile_b = max(8, (tile_b // 8) * 8)       # sublane-aligned
    return tile_b, tile_l


def _np_affine_scale(key_bool, block_size, C, H, W, dtype):
    """Build the (1, C*H*W) scale vector a = 1 - 2*key in x's flattened NCHW order."""
    bs = block_size
    a0, a1 = H // bs, W // bs
    # Segmented last-dim index = (h % bs) * bs * C + (w % bs) * C + c   (HWC order).
    key3 = key_bool.reshape(bs, bs, C)
    m_hwc = jnp.tile(key3, (a0, a1, 1))                        # (H, W, C)
    m = jnp.transpose(m_hwc, (2, 0, 1)).reshape(1, C * H * W)  # CHW order, matches x flatten
    return (1.0 - 2.0 * m.astype(jnp.float32)).astype(dtype)


@functools.partial(jax.jit, static_argnames=("block_size", "force_pallas"))
def np_forward(x, key_bool, block_size, force_pallas=False):
    """x: (B, 3, H, W) float32 NCHW.  key_bool: (block_size*block_size*3,) bool."""
    B, C, H, W = x.shape
    assert C == 3, "NP transform assumes 3 channels"
    assert H % block_size == 0 and W % block_size == 0, "Image not divisible by block_size"
    CHW = C * H * W

    a_vec = _np_affine_scale(key_bool, block_size, C, H, W, x.dtype)
    x2 = x.reshape(B, CHW)                       # lane-dense flattening (C,H,W row-major)

    total_bytes = B * CHW * x2.dtype.itemsize
    if not force_pallas and total_bytes < _MIN_PALLAS_BYTES:
        # Toy sizes: a standalone pallas_call is pure launch/pipeline overhead —
        # let XLA fuse the elementwise expression (or fuse into the adjacent kernel).
        out2 = x2 * a_vec + (1.0 - a_vec) * 0.5
        return out2.reshape(B, C, H, W)

    tile_b, tile_l = _choose_tiles(B, CHW, x2.dtype.itemsize)
    grid = (pl.cdiv(B, tile_b), pl.cdiv(CHW, tile_l))

    out2 = pl.pallas_call(
        np_affine_kernel,
        out_shape=jax.ShapeDtypeStruct((B, CHW), x.dtype),
        grid=grid,
        in_specs=[
            pl.BlockSpec((tile_b, tile_l), lambda i, j: (i, j)),
            pl.BlockSpec((1, tile_l), lambda i, j: (0, j)),
        ],
        out_specs=pl.BlockSpec((tile_b, tile_l), lambda i, j: (i, j)),
        compiler_params=pltpu.CompilerParams(
            dimension_semantics=("parallel", "parallel"),
            vmem_limit_bytes=_VMEM_LIMIT_BYTES,
        ),
        # TODO(synk): input_output_aliases={0: 0} would reuse x's HBM buffer, but here
        # x is a non-donated jit entry param (XLA would insert a defensive copy);
        # enable it when the caller donates the activation tensor.
    )(x2, a_vec)

    return out2.reshape(B, C, H, W)


# -------------------------- pure-JAX reference -------------------------------
def np_forward_ref(x, key_bool, block_size):
    """Mirrors the PyTorch segment -> masked flip -> integrate exactly."""
    B, C, H, W = x.shape
    bs = block_size
    a0, a1 = H // bs, W // bs
    Xs = jnp.transpose(x, (0, 2, 3, 1))                                   # NHWC
    Xs = Xs.reshape(B, a0, bs, a1, bs, 3)
    Xs = jnp.transpose(Xs, (0, 1, 3, 2, 4, 5))
    Xs = Xs.reshape(B, a0, a1, bs * bs * 3)
    Xs = jnp.where(key_bool[None, None, None, :], 1.0 - Xs, Xs)
    Xi = Xs.reshape(B, a0, a1, bs, bs, 3)
    Xi = jnp.transpose(Xi, (0, 1, 3, 2, 4, 5))
    Xi = Xi.reshape(B, a0 * bs, a1 * bs, 3)
    return jnp.transpose(Xi, (0, 3, 1, 2))                                # NCHW


# ------------------------------- key setup -----------------------------------
def generate_key(seed, block_size):
    # Mirrors BlockTransform.generate_key(seed, binary=True):
    # random permutation of [0, bs*bs*3), then key = perm > len/2.
    # TODO(synk): torch.randperm(seed) is not bit-reproducible in JAX; we use
    # jax.random.permutation with the same seed (deterministic in-script).
    n = block_size * block_size * 3
    perm = jax.random.permutation(jax.random.PRNGKey(seed), jnp.arange(n))
    return perm > (n / 2)


if __name__ == "__main__":
    root = jax.random.PRNGKey(0)

    # (B, H, W, block_size):
    #  - tiny CIFAR-style config (single full-batch block)
    #  - 2 row-tiles (exercises the >=2-grid-step / dual-TC path)
    #  - B=10 (exercises the cdiv grid with a ragged trailing row block)
    configs = [
        (2, 16, 16, 4),
        (32, 32, 32, 8),
        (10, 16, 16, 4),
    ]

    for idx, (B, H, W, bs) in enumerate(configs):
        key_bool = generate_key(idx, bs)
        x = jax.random.uniform(jax.random.fold_in(root, idx), (B, 3, H, W),
                               dtype=jnp.float32)
        out = np_forward(x, key_bool, bs, force_pallas=True)   # force the Pallas path
        out = jax.block_until_ready(out)
        ref = np_forward_ref(x, key_bool, bs)
        assert out.shape == (B, 3, H, W)
        assert jnp.allclose(out, ref, atol=1e-6), f"Pallas mismatch vs reference (config {idx})"

    # Also check the small-size fused-jnp fallback path (default threshold).
    B, H, W, bs = configs[0]
    key_bool = generate_key(0, bs)
    x = jax.random.uniform(jax.random.fold_in(root, 0), (B, 3, H, W), dtype=jnp.float32)
    out_fb = jax.block_until_ready(np_forward(x, key_bool, bs))
    assert jnp.allclose(out_fb, np_forward_ref(x, key_bool, bs), atol=1e-6)

    print("KERNEL_OK")
</pallas_src>

<mosaic_0001>
module attributes {stable_mosaic.version = 11 : i64} {
  func.func @np_affine_kernel(%arg0: i32, %arg1: i32, %arg2: memref<2x768xf32, #tpu.memory_space<vmem>>, %arg3: memref<1x768xf32, #tpu.memory_space<vmem>>, %arg4: memref<2x768xf32, #tpu.memory_space<vmem>>) attributes {dimension_semantics = [#tpu.dimension_semantics<parallel>, #tpu.dimension_semantics<parallel>], iteration_bounds = array<i64: 1, 1>, scalar_prefetch = 0 : i64, scratch_operands = 0 : i64, tpu.core_type = #tpu.core_type<tc>, window_params = [{transform_indices = @transform_0, window_bounds = array<i64: 2, 768>}, {transform_indices = @transform_1, window_bounds = array<i64: 1, 768>}, {transform_indices = @transform_2, window_bounds = array<i64: 2, 768>}]} {
    %c0 = arith.constant 0 : index
    %c0_0 = arith.constant 0 : index
    %0 = vector.load %arg3[%c0, %c0_0] : memref<1x768xf32, #tpu.memory_space<vmem>>, vector<1x768xf32>
    %cst = arith.constant 1.000000e+00 : f32
    %1 = vector.broadcast %cst : f32 to vector<1x768xf32>
    %2 = arith.subf %1, %0 : vector<1x768xf32>
    %cst_1 = arith.constant 5.000000e-01 : f32
    %3 = vector.broadcast %cst_1 : f32 to vector<1x768xf32>
    %4 = arith.mulf %2, %3 : vector<1x768xf32>
    %c0_2 = arith.constant 0 : index
    %c0_3 = arith.constant 0 : index
    %5 = vector.load %arg2[%c0_2, %c0_3] : memref<2x768xf32, #tpu.memory_space<vmem>>, vector<2x768xf32>
    %6 = vector.broadcast %0 : vector<1x768xf32> to vector<2x768xf32>
    %7 = arith.mulf %5, %6 : vector<2x768xf32>
    %8 = vector.broadcast %4 : vector<1x768xf32> to vector<2x768xf32>
    %9 = arith.addf %7, %8 : vector<2x768xf32>
    %c0_4 = arith.constant 0 : index
    %c0_5 = arith.constant 0 : index
    %10 = vector.load %arg4[%c0_4, %c0_5] : memref<2x768xf32, #tpu.memory_space<vmem>>, vector<2x768xf32>
    tpu.vector_store %arg4[%c0_4, %c0_5], %9 {strides = array<i32>} : memref<2x768xf32, #tpu.memory_space<vmem>>, vector<2x768xf32>,
    return
  }
  func.func @transform_0(%arg0: i32, %arg1: i32) -> (i32, i32) {
    %c0_i32 = arith.constant 0 : i32
    return %arg0, %arg1 : i32, i32
  }
  func.func @transform_1(%arg0: i32, %arg1: i32) -> (i32, i32) {
    %c0_i32 = arith.constant 0 : i32
    %c0_i32_0 = arith.constant 0 : i32
    return %c0_i32, %arg1 : i32, i32
  }
  func.func @transform_2(%arg0: i32, %arg1: i32) -> (i32, i32) {
    %c0_i32 = arith.constant 0 : i32
    return %arg0, %arg1 : i32, i32
  }
}

</mosaic_0001>

<llo_original>
// kernel: np_forward.1
$region0: #{np_forward.1}
  #allocation0 [shape = 'u32[]', space=smem, size = 0x4, offset = 0x4, fixed_abs, tag = 'smem constant byte address 0x4 - core index']
  #allocation1 [shape = 'u32[144,128]{1,0:T(1,128)}', space=vmem, size = 0x12000, scoped, tag = 'internal scratch']
  %s0 = inlined_call_operand.vmem [shape: f32[2,768], index: 0, kind: input, shape index: {}]
  %s1 = inlined_call_operand.vmem [shape: f32[1,768], index: 1, kind: input, shape index: {}]
  %s2 = inlined_call_operand.vmem [shape: f32[2,768], index: 2, kind: output, shape index: {}]
  %s3 = sld [smem:[#allocation0]]
  $region18: #{np_forward.1} parent=0
    _
  %s5 = ssub.s32 1, %s3
  %s6 = scalar_select 0, %s5, %s3
  // Predicated region
  $region2: #{np_forward.1} parent=0 // pred_check
    _
  $region3: #{np_forward.1} parent=0 // pred_check_branch
    %8 = sbr.rel (0) target = $region5
  $region4: #{np_forward.1} parent=0 // pred_region
    _
  $region5: #{np_forward.1} parent=0 // pred_fallthru
    _
  // Predicated region
  $region6: #{np_forward.1} parent=0 // pred_check
    _
  $region7: #{np_forward.1} parent=0 // pred_check_branch
    %10 = sbr.rel (0) target = $region9
  $region8: #{np_forward.1} parent=0 // pred_region
    _
  $region9: #{np_forward.1} parent=0 // pred_fallthru
    _
  %v11 = vld [vmem:[%s1] sm:$0x3f]
  %v12 = vsub.f32 1.0, %v11
  %v13 = vmul.f32 %v12, 0.5
  %v14 = vld [vmem:[%s0] sm:$0xff]
  %v15 = vld [vmem:[%s0 + $0x8] sm:$0xf]
  %v17 = vlaneseq
  %v18 = vshrl.u32 %v17, 7
  %v19 = vsub.s32 0, %v18
  %v20 = vrot.slane %v11, %v19
  %v21 = vlaneseq
  %v22 = vshrl.u32 %v21, 7
  %v23 = vsub.s32 1, %v22
  %v24 = vrot.slane %v11, %v23
  %v25 = vlaneseq
  %v26 = vshrl.u32 %v25, 7
  %v27 = vsub.s32 2, %v26
  %v28 = vrot.slane %v11, %v27
  %v29 = vlaneseq
  %v30 = vshrl.u32 %v29, 7
  %v31 = vsub.s32 3, %v30
  %v32 = vrot.slane %v11, %v31
  %v33 = vlaneseq
  %v34 = vshrl.u32 %v33, 7
  %v35 = vsub.s32 4, %v34
  %v36 = vrot.slane %v11, %v35
  %v37 = vlaneseq
  %v38 = vshrl.u32 %v37, 7
  %v39 = vsub.s32 5, %v38
  %v40 = vrot.slane %v11, %v39
  %v41 = vcombine.low %v20, %v24
  %v42 = vcombine.low %v28, %v32
  %v44 = vunpack.c.l.s4 1983009808
  %v45 = vunpack.c.0.s8 %v44
  %v46 = vlaneseq
  %v47 = vshrl.u32 %v46, 7
  %v48 = vsub.s32 %v45, %v47
  %v49 = vrot.slane %v41, %v48
  %v51 = vunpack.c.l.s4 1983009808
  %v52 = vunpack.c.0.s8 %v51
  %v53 = vlaneseq
  %v54 = vshrl.u32 %v53, 7
  %v55 = vsub.s32 %v52, %v54
  %v56 = vrot.slane %v42, %v55
  %v57 = vcombine.low %v49, %v56
  %v58 = vcombine.low %v36, %v40
  %v60 = vunpack.c.l.s4 1983009808
  %v61 = vunpack.c.0.s8 %v60
  %v62 = vlaneseq
  %v63 = vshrl.u32 %v62, 7
  %v64 = vsub.s32 %v61, %v63
  %v65 = vrot.slane %v58, %v64
  %v68 = vmul.f32 %v14, %v57
  %v69 = vmul.f32 %v15, %v65
  %v71 = vlaneseq
  %v72 = vshrl.u32 %v71, 7
  %v73 = vsub.s32 0, %v72
  %v74 = vrot.slane %v13, %v73
  %v75 = vlaneseq
  %v76 = vshrl.u32 %v75, 7
  %v77 = vsub.s32 1, %v76
  %v78 = vrot.slane %v13, %v77
  %v79 = vlaneseq
  %v80 = vshrl.u32 %v79, 7
  %v81 = vsub.s32 2, %v80
  %v82 = vrot.slane %v13, %v81
  %v83 = vlaneseq
  %v84 = vshrl.u32 %v83, 7
  %v85 = vsub.s32 3, %v84
  %v86 = vrot.slane %v13, %v85
  %v87 = vlaneseq
  %v88 = vshrl.u32 %v87, 7
  %v89 = vsub.s32 4, %v88
  %v90 = vrot.slane %v13, %v89
  %v91 = vlaneseq
  %v92 = vshrl.u32 %v91, 7
  %v93 = vsub.s32 5, %v92
  %v94 = vrot.slane %v13, %v93
  %v95 = vcombine.low %v74, %v78
  %v96 = vcombine.low %v82, %v86
  %v98 = vunpack.c.l.s4 1983009808
  %v99 = vunpack.c.0.s8 %v98
  %v100 = vlaneseq
  %v101 = vshrl.u32 %v100, 7
  %v102 = vsub.s32 %v99, %v101
  %v103 = vrot.slane %v95, %v102
  %v105 = vunpack.c.l.s4 1983009808
  %v106 = vunpack.c.0.s8 %v105
  %v107 = vlaneseq
  %v108 = vshrl.u32 %v107, 7
  %v109 = vsub.s32 %v106, %v108
  %v110 = vrot.slane %v96, %v109
  %v111 = vcombine.low %v103, %v110
  %v112 = vcombine.low %v90, %v94
  %v114 = vunpack.c.l.s4 1983009808
  %v115 = vunpack.c.0.s8 %v114
  %v116 = vlaneseq
  %v117 = vshrl.u32 %v116, 7
  %v118 = vsub.s32 %v115, %v117
  %v119 = vrot.slane %v112, %v118
  %v122 = vadd.f32 %v68, %v111
  %v123 = vadd.f32 %v69, %v119
  %124 = vst [vmem:[%s2] sm:$0xff] %v122
  %125 = vst [vmem:[%s2 + $0x8] sm:$0xf] %v123
  // Predicated region
  $region10: #{np_forward.1} parent=0 // pred_check
    _
  $region11: #{np_forward.1} parent=0 // pred_check_branch
    %127 = sbr.rel (0) target = $region13
  $region12: #{np_forward.1} parent=0 // pred_region
    _
  $region13: #{np_forward.1} parent=0 // pred_fallthru
    _
  // Predicated region
  $region14: #{np_forward.1} parent=0 // pred_check
    _
  $region15: #{np_forward.1} parent=0 // pred_check_branch
    %129 = sbr.rel (0) target = $region17
  $region16: #{np_forward.1} parent=0 // pred_region
    _
  $region17: #{np_forward.1} parent=0 // pred_fallthru
    _

</llo_original>
